<compile_context>
chip_gen: v6e
topology: v6e:2x2x1
jax: 0.10.0
libtpu: 0.0.40
codegen_flags: <defaults>
</compile_context>

<pallas_src>
import math

import jax
import jax.numpy as jnp
from jax.experimental import pallas as pl
from jax.experimental.pallas import tpu as pltpu


def _gelu_tanh(x):
    # TODO(synk): torch F.gelu defaults to the exact erf GELU; the tanh
    # approximation is used here for guaranteed Mosaic lowering (|err| ~ 3e-4).
    c = math.sqrt(2.0 / math.pi)
    return 0.5 * x * (1.0 + jnp.tanh(c * (x + 0.044715 * x * x * x)))


def _feed_forward_kernel(x_ref, w1a_ref, w1b_ref, b1a_ref, b1b_ref,
                         w2_ref, b2_ref, o_ref, acc_ref):
    # x_ref:       (tm, Cin)                 (caller dtype, e.g. bf16)
    # w1a/w1b_ref: (Cin, tH)   b1a/b1b_ref:  (1, tH)
    # w2_ref:      (tH, Cout)  b2_ref:       (1, Cout)
    # o_ref:       (tm, Cout)  acc_ref:      (tm, Cout) f32 scratch
    k = pl.program_id(1)

    @pl.when(k == 0)
    def _init():
        acc_ref[...] = jnp.zeros_like(acc_ref)

    x = x_ref[...]
    # First projection: both GEGLU halves, bf16/native-dtype MXU inputs with
    # f32 accumulation.
    h1 = jnp.dot(x, w1a_ref[...], preferred_element_type=jnp.float32)
    h2 = jnp.dot(x, w1b_ref[...], preferred_element_type=jnp.float32)
    h1 = h1 + b1a_ref[...].astype(jnp.float32)
    h2 = h2 + b1b_ref[...].astype(jnp.float32)
    # GEGLU gating on the f32 accumulators (VPU mul/add, EUP tanh).
    g = h1 * _gelu_tanh(h2)
    # Second projection: feed the MXU in the weight dtype; accumulate in-place
    # into the f32 scratch as a single expression (v7x MRB-friendly).
    acc_ref[...] += jnp.dot(g.astype(w2_ref.dtype), w2_ref[...],
                            preferred_element_type=jnp.float32)

    @pl.when(k == pl.num_programs(1) - 1)
    def _finalize():
        o_ref[...] = (acc_ref[...]
                      + b2_ref[...].astype(jnp.float32)).astype(o_ref.dtype)


def _pick_tile(total, target, align):
    """Largest multiple of `align` that divides `total` and is <= `target`;
    falls back to `total` (fully resident) if no such divisor exists."""
    if total <= target:
        return total
    t = (target // align) * align
    while t >= align:
        if total % t == 0:
            return t
        t -= align
    return total


def _physical_vmem_bytes():
    try:
        return int(pltpu.get_tpu_info().vmem_capacity_bytes)
    except Exception:
        return 64 * 1024 * 1024   # conservative (v7x per-core VMEM)


def feed_forward(x, w1, b1, w2, b2, *, block_m=None, block_h=512):
    """FeedForward forward pass (GEGLU -> Linear), fused in one pallas_call.

    x : (..., Cin)                       (any float dtype; bf16 = fast path)
    w1: (Cin, 2H), b1: (2H,)             -- GEGLU proj (in, out) layout
    w2: (H, Cout), b2: (Cout,)           -- output Linear
    returns (..., Cout) in x.dtype
    """
    *lead, cin = x.shape
    two_h = w1.shape[1]
    hidden = two_h // 2
    cout = w2.shape[1]
    m = math.prod(lead) if lead else 1

    x2d = x.reshape(m, cin)
    b2_2d = b2.reshape(1, cout)

    phys_vmem = _physical_vmem_bytes()
    if block_m is None:
        # 256 rows on 64-MiB-VMEM chips (v7x), 512 on 128-MiB chips (v5e/v6e).
        block_m = 256 if phys_vmem <= 64 * 1024 * 1024 else 512
    tm = m if m <= block_m else block_m

    lane_split_ok = (hidden % 128 == 0)
    if lane_split_ok:
        # Address the two GEGLU halves as lane-blocks of W1 / b1 directly:
        # no HBM->HBM weight copy per call.
        th = _pick_tile(hidden, block_h, 128)
        n_h = hidden // th
        b1_2d = b1.reshape(1, two_h)
        w1a_arg = w1b_arg = w1
        b1a_arg = b1b_arg = b1_2d
        w1a_spec = pl.BlockSpec((cin, th), lambda i, k: (0, k))
        w1b_spec = pl.BlockSpec((cin, th), lambda i, k: (0, k + n_h))
        b1a_spec = pl.BlockSpec((1, th), lambda i, k: (0, k))
        b1b_spec = pl.BlockSpec((1, th), lambda i, k: (0, k + n_h))
    else:
        # TODO(synk): hidden widths that are not multiples of 128 cannot be
        # lane-block addressed inside W1; fall back to a host-side split.
        th = hidden
        n_h = 1
        w1a_arg, w1b_arg = w1[:, :hidden], w1[:, hidden:]
        b1a_arg = b1[:hidden].reshape(1, hidden)
        b1b_arg = b1[hidden:].reshape(1, hidden)
        w1a_spec = w1b_spec = pl.BlockSpec((cin, hidden), lambda i, k: (0, 0))
        b1a_spec = b1b_spec = pl.BlockSpec((1, hidden), lambda i, k: (0, 0))

    grid = (pl.cdiv(m, tm), n_h)   # rows "parallel", H reduction "arbitrary"

    x_spec = pl.BlockSpec((tm, cin), lambda i, k: (i, 0))
    w2_spec = pl.BlockSpec((th, cout), lambda i, k: (k, 0))
    b2_spec = pl.BlockSpec((1, cout), lambda i, k: (0, 0))
    out_spec = pl.BlockSpec((tm, cout), lambda i, k: (i, 0))
    # TODO(synk): for very small Cout (<128) the output store is a masked
    # vst.msk; folding rows into lanes (lane-dense slab) would remove it but
    # changes the output layout, so it is not done here.

    in_b = jnp.dtype(x.dtype).itemsize
    w_b = jnp.dtype(w1.dtype).itemsize
    out_b = in_b

    # VMEM footprint of one pipelined step (double buffers + f32 scratch +
    # live f32 intermediates); used to set the scoped-VMEM limit explicitly.
    est = (2 * tm * cin * in_b
           + 2 * tm * cout * out_b
           + 2 * (2 * cin * th + th * cout) * w_b
           + 2 * (2 * th + cout) * w_b
           + tm * cout * 4
           + 3 * tm * th * 4)
    vmem_limit = int(min(max(int(est * 1.5), 16 * 1024 * 1024),
                         int(phys_vmem * 0.85)))

    cost = pl.CostEstimate(
        flops=2 * m * cin * two_h + 2 * m * hidden * cout + 6 * m * hidden,
        transcendentals=m * hidden,
        bytes_accessed=(in_b * m * cin
                        + w_b * (cin * two_h + hidden * cout + two_h + cout)
                        + out_b * m * cout),
    )

    out2d = pl.pallas_call(
        _feed_forward_kernel,
        out_shape=jax.ShapeDtypeStruct((m, cout), x.dtype),
        grid=grid,
        in_specs=[x_spec, w1a_spec, w1b_spec, b1a_spec, b1b_spec,
                  w2_spec, b2_spec],
        out_specs=out_spec,
        scratch_shapes=[pltpu.VMEM((tm, cout), jnp.float32)],
        compiler_params=pltpu.CompilerParams(
            dimension_semantics=("parallel", "arbitrary"),
            vmem_limit_bytes=vmem_limit),
        cost_estimate=cost,
    )(x2d, w1a_arg, w1b_arg, b1a_arg, b1b_arg, w2, b2_2d)

    return out2d.reshape(*lead, cout)


if __name__ == "__main__":
    key = jax.random.PRNGKey(0)
    batch, seq = 2, 8
    in_channels, out_channels = 32, 32
    hidden = out_channels * 4          # GEGLU inner width = 128

    k1, k2, k3, k4, k5 = jax.random.split(key, 5)
    x = jax.random.normal(k1, (batch, seq, in_channels), dtype=jnp.float32)
    w1 = jax.random.normal(k2, (in_channels, 2 * hidden), dtype=jnp.float32) * 0.05
    b1 = jax.random.normal(k3, (2 * hidden,), dtype=jnp.float32) * 0.05
    w2 = jax.random.normal(k4, (hidden, out_channels), dtype=jnp.float32) * 0.05
    b2 = jax.random.normal(k5, (out_channels,), dtype=jnp.float32) * 0.05

    # Pure-JAX reference mirroring the PyTorch module:
    #   h = x @ W1 + b1 ; x1, x2 = chunk(h, 2, -1) ; g = x1 * gelu(x2)
    #   y = g @ W2 + b2
    def reference(xv):
        h = xv.reshape(-1, in_channels) @ w1 + b1
        x1r, x2r = h[:, :hidden], h[:, hidden:]
        y = (x1r * _gelu_tanh(x2r)) @ w2 + b2
        return y.reshape(batch, seq, out_channels)

    ref = reference(x)

    # --- f32 path (tight precision check) ---
    out = jax.block_until_ready(feed_forward(x, w1, b1, w2, b2))
    assert out.shape == (batch, seq, out_channels)
    assert out.dtype == x.dtype
    assert bool(jnp.allclose(out, ref, atol=1e-5, rtol=1e-5))

    # --- bf16 fast path (bf16 MXU inputs, f32 accumulation) ---
    x_bf = x.astype(jnp.bfloat16)
    w1_bf = w1.astype(jnp.bfloat16)
    b1_bf = b1.astype(jnp.bfloat16)
    w2_bf = w2.astype(jnp.bfloat16)
    b2_bf = b2.astype(jnp.bfloat16)
    out_bf = jax.block_until_ready(feed_forward(x_bf, w1_bf, b1_bf, w2_bf, b2_bf))
    assert out_bf.dtype == jnp.bfloat16
    assert bool(jnp.allclose(out_bf.astype(jnp.float32), ref,
                             atol=3e-2, rtol=3e-2))

    print("KERNEL_OK")
</pallas_src>

<mosaic_0001>
module attributes {stable_mosaic.version = 11 : i64} {
  func.func @_feed_forward_kernel(%arg0: i32, %arg1: i32, %arg2: memref<16x32xf32, #tpu.memory_space<vmem>>, %arg3: memref<32x128xf32, #tpu.memory_space<vmem>>, %arg4: memref<32x128xf32, #tpu.memory_space<vmem>>, %arg5: memref<1x128xf32, #tpu.memory_space<vmem>>, %arg6: memref<1x128xf32, #tpu.memory_space<vmem>>, %arg7: memref<128x32xf32, #tpu.memory_space<vmem>>, %arg8: memref<1x32xf32, #tpu.memory_space<vmem>>, %arg9: memref<16x32xf32, #tpu.memory_space<vmem>>, %arg10: memref<16x32xf32, #tpu.memory_space<vmem>>) attributes {dimension_semantics = [#tpu.dimension_semantics<parallel>, #tpu.dimension_semantics<arbitrary>], iteration_bounds = array<i64: 1, 1>, scalar_prefetch = 0 : i64, scratch_operands = 1 : i64, tpu.core_type = #tpu.core_type<tc>, window_params = [{transform_indices = @transform_0, window_bounds = array<i64: 16, 32>}, {transform_indices = @transform_1, window_bounds = array<i64: 32, 128>}, {transform_indices = @transform_2, window_bounds = array<i64: 32, 128>}, {transform_indices = @transform_3, window_bounds = array<i64: 1, 128>}, {transform_indices = @transform_4, window_bounds = array<i64: 1, 128>}, {transform_indices = @transform_5, window_bounds = array<i64: 128, 32>}, {pipeline_mode = #tpu.pipeline_mode<synchronous>, transform_indices = @transform_6, window_bounds = array<i64: 1, 32>}, {transform_indices = @transform_7, window_bounds = array<i64: 16, 32>}]} {
    %c0_i32 = arith.constant 0 : i32
    %0 = arith.cmpi eq, %arg1, %c0_i32 : i32
    %1 = arith.extui %0 : i1 to i32
    %c0_i32_0 = arith.constant 0 : i32
    %2 = arith.cmpi ne, %1, %c0_i32_0 : i32
    scf.if %2 {
      %cst_24 = arith.constant 0.000000e+00 : f32
      %36 = vector.broadcast %cst_24 : f32 to vector<16x32xf32>
      %c0_25 = arith.constant 0 : index
      %c0_26 = arith.constant 0 : index
      %37 = vector.load %arg10[%c0_25, %c0_26] : memref<16x32xf32, #tpu.memory_space<vmem>>, vector<16x32xf32>
      tpu.vector_store %arg10[%c0_25, %c0_26], %36 {strides = array<i32>} : memref<16x32xf32, #tpu.memory_space<vmem>>, vector<16x32xf32>,
    } else {
    }
    %c0 = arith.constant 0 : index
    %c0_1 = arith.constant 0 : index
    %3 = vector.load %arg2[%c0, %c0_1] : memref<16x32xf32, #tpu.memory_space<vmem>>, vector<16x32xf32>
    %c0_2 = arith.constant 0 : index
    %c0_3 = arith.constant 0 : index
    %4 = vector.load %arg3[%c0_2, %c0_3] : memref<32x128xf32, #tpu.memory_space<vmem>>, vector<32x128xf32>
    %cst = arith.constant dense<0.000000e+00> : vector<16x128xf32>
    %5 = tpu.matmul %3, %4, %cst {dimension_numbers = #tpu.dot_dimension_numbers<[1], [0], [0], [1], [0, 0, 1, 1], [], []>} : vector<16x32xf32>, vector<32x128xf32>, vector<16x128xf32> -> vector<16x128xf32>
    %c0_4 = arith.constant 0 : index
    %c0_5 = arith.constant 0 : index
    %6 = vector.load %arg4[%c0_4, %c0_5] : memref<32x128xf32, #tpu.memory_space<vmem>>, vector<32x128xf32>
    %cst_6 = arith.constant dense<0.000000e+00> : vector<16x128xf32>
    %7 = tpu.matmul %3, %6, %cst_6 {dimension_numbers = #tpu.dot_dimension_numbers<[1], [0], [0], [1], [0, 0, 1, 1], [], []>} : vector<16x32xf32>, vector<32x128xf32>, vector<16x128xf32> -> vector<16x128xf32>
    %c0_7 = arith.constant 0 : index
    %c0_8 = arith.constant 0 : index
    %8 = vector.load %arg5[%c0_7, %c0_8] : memref<1x128xf32, #tpu.memory_space<vmem>>, vector<1x128xf32>
    %9 = vector.broadcast %8 : vector<1x128xf32> to vector<16x128xf32>
    %10 = arith.addf %5, %9 : vector<16x128xf32>
    %c0_9 = arith.constant 0 : index
    %c0_10 = arith.constant 0 : index
    %11 = vector.load %arg6[%c0_9, %c0_10] : memref<1x128xf32, #tpu.memory_space<vmem>>, vector<1x128xf32>
    %12 = vector.broadcast %11 : vector<1x128xf32> to vector<16x128xf32>
    %13 = arith.addf %7, %12 : vector<16x128xf32>
    %cst_11 = arith.constant 5.000000e-01 : f32
    %14 = vector.broadcast %cst_11 : f32 to vector<16x128xf32>
    %15 = arith.mulf %14, %13 : vector<16x128xf32>
    %cst_12 = arith.constant 4.471500e-02 : f32
    %16 = vector.broadcast %cst_12 : f32 to vector<16x128xf32>
    %17 = arith.mulf %16, %13 : vector<16x128xf32>
    %18 = arith.mulf %17, %13 : vector<16x128xf32>
    %19 = arith.mulf %18, %13 : vector<16x128xf32>
    %20 = arith.addf %13, %19 : vector<16x128xf32>
    %cst_13 = arith.constant 0.797884583 : f32
    %21 = vector.broadcast %cst_13 : f32 to vector<16x128xf32>
    %22 = arith.mulf %21, %20 : vector<16x128xf32>
    %23 = math.tanh %22 : vector<16x128xf32>
    %cst_14 = arith.constant 1.000000e+00 : f32
    %24 = vector.broadcast %cst_14 : f32 to vector<16x128xf32>
    %25 = arith.addf %24, %23 : vector<16x128xf32>
    %26 = arith.mulf %15, %25 : vector<16x128xf32>
    %27 = arith.mulf %10, %26 : vector<16x128xf32>
    %c0_15 = arith.constant 0 : index
    %c0_16 = arith.constant 0 : index
    %28 = vector.load %arg10[%c0_15, %c0_16] : memref<16x32xf32, #tpu.memory_space<vmem>>, vector<16x32xf32>
    %c0_17 = arith.constant 0 : index
    %c0_18 = arith.constant 0 : index
    %29 = vector.load %arg7[%c0_17, %c0_18] : memref<128x32xf32, #tpu.memory_space<vmem>>, vector<128x32xf32>
    %cst_19 = arith.constant dense<0.000000e+00> : vector<16x32xf32>
    %30 = tpu.matmul %27, %29, %cst_19 {dimension_numbers = #tpu.dot_dimension_numbers<[1], [0], [0], [1], [0, 0, 1, 1], [], []>} : vector<16x128xf32>, vector<128x32xf32>, vector<16x32xf32> -> vector<16x32xf32>
    %31 = arith.addf %28, %30 : vector<16x32xf32>
    %c0_20 = arith.constant 0 : index
    %c0_21 = arith.constant 0 : index
    %32 = vector.load %arg10[%c0_20, %c0_21] : memref<16x32xf32, #tpu.memory_space<vmem>>, vector<16x32xf32>
    tpu.vector_store %arg10[%c0_20, %c0_21], %31 {strides = array<i32>} : memref<16x32xf32, #tpu.memory_space<vmem>>, vector<16x32xf32>,
    %c0_i32_22 = arith.constant 0 : i32
    %33 = arith.cmpi eq, %arg1, %c0_i32_22 : i32
    %34 = arith.extui %33 : i1 to i32
    %c0_i32_23 = arith.constant 0 : i32
    %35 = arith.cmpi ne, %34, %c0_i32_23 : i32
    scf.if %35 {
      %c0_24 = arith.constant 0 : index
      %c0_25 = arith.constant 0 : index
      %36 = vector.load %arg10[%c0_24, %c0_25] : memref<16x32xf32, #tpu.memory_space<vmem>>, vector<16x32xf32>
      %c0_26 = arith.constant 0 : index
      %c0_27 = arith.constant 0 : index
      %37 = vector.load %arg8[%c0_26, %c0_27] : memref<1x32xf32, #tpu.memory_space<vmem>>, vector<1x32xf32>
      %38 = vector.broadcast %37 : vector<1x32xf32> to vector<16x32xf32>
      %39 = arith.addf %36, %38 : vector<16x32xf32>
      %c0_28 = arith.constant 0 : index
      %c0_29 = arith.constant 0 : index
      %40 = vector.load %arg9[%c0_28, %c0_29] : memref<16x32xf32, #tpu.memory_space<vmem>>, vector<16x32xf32>
      tpu.vector_store %arg9[%c0_28, %c0_29], %39 {strides = array<i32>} : memref<16x32xf32, #tpu.memory_space<vmem>>, vector<16x32xf32>,
    } else {
    }
    return
  }
  func.func @transform_0(%arg0: i32, %arg1: i32) -> (i32, i32) {
    %c0_i32 = arith.constant 0 : i32
    %c0_i32_0 = arith.constant 0 : i32
    return %arg0, %c0_i32 : i32, i32
  }
  func.func @transform_1(%arg0: i32, %arg1: i32) -> (i32, i32) {
    %c0_i32 = arith.constant 0 : i32
    %c0_i32_0 = arith.constant 0 : i32
    return %c0_i32, %arg1 : i32, i32
  }
  func.func @transform_2(%arg0: i32, %arg1: i32) -> (i32, i32) {
    %c1_i32 = arith.constant 1 : i32
    %0 = arith.addi %arg1, %c1_i32 : i32
    %c0_i32 = arith.constant 0 : i32
    %c0_i32_0 = arith.constant 0 : i32
    return %c0_i32, %0 : i32, i32
  }
  func.func @transform_3(%arg0: i32, %arg1: i32) -> (i32, i32) {
    %c0_i32 = arith.constant 0 : i32
    %c0_i32_0 = arith.constant 0 : i32
    return %c0_i32, %arg1 : i32, i32
  }
  func.func @transform_4(%arg0: i32, %arg1: i32) -> (i32, i32) {
    %c1_i32 = arith.constant 1 : i32
    %0 = arith.addi %arg1, %c1_i32 : i32
    %c0_i32 = arith.constant 0 : i32
    %c0_i32_0 = arith.constant 0 : i32
    return %c0_i32, %0 : i32, i32
  }
  func.func @transform_5(%arg0: i32, %arg1: i32) -> (i32, i32) {
    %c0_i32 = arith.constant 0 : i32
    %c0_i32_0 = arith.constant 0 : i32
    return %arg1, %c0_i32 : i32, i32
  }
  func.func @transform_6(%arg0: i32, %arg1: i32) -> (i32, i32) {
    %c0_i32 = arith.constant 0 : i32
    %c0_i32_0 = arith.constant 0 : i32
    %c0_i32_1 = arith.constant 0 : i32
    return %c0_i32, %c0_i32_0 : i32, i32
  }
  func.func @transform_7(%arg0: i32, %arg1: i32) -> (i32, i32) {
    %c0_i32 = arith.constant 0 : i32
    %c0_i32_0 = arith.constant 0 : i32
    return %arg0, %c0_i32 : i32, i32
  }
}

</mosaic_0001>

<llo_original>
// kernel: tpu_custom_call.1
$region0: #{tpu_custom_call.1}
  #allocation0 [shape = 'u32[]', space=smem, size = 0x4, offset = 0x4, fixed_abs, tag = 'smem constant byte address 0x4 - core index']
  #allocation1 [shape = 'u32[144,128]{1,0:T(1,128)}', space=vmem, size = 0x12000, scoped, tag = 'internal scratch']
  #allocation2 [shape = 'f32[16,32]{1,0:T(8,128)}', space=vmem, size = 0x2000, scoped, tag = 'scratch operand']
  %s0 = inlined_call_operand.vmem [shape: f32[16,32], index: 0, kind: input, shape index: {}]
  %s1 = inlined_call_operand.vmem [shape: f32[32,256], index: 1, kind: input, shape index: {}]
  %s2 = inlined_call_operand.vmem [shape: f32[32,256], index: 2, kind: input, shape index: {}]
  %s3 = inlined_call_operand.vmem [shape: f32[1,256], index: 3, kind: input, shape index: {}]
  %s4 = inlined_call_operand.vmem [shape: f32[1,256], index: 4, kind: input, shape index: {}]
  %s5 = inlined_call_operand.vmem [shape: f32[128,32], index: 5, kind: input, shape index: {}]
  %s6 = inlined_call_operand.vmem [shape: f32[1,32], index: 6, kind: input, shape index: {}]
  %s7 = inlined_call_operand.hbm [shape: f32[16,32], index: 7, kind: output, shape index: {}]
  %s8 = sld [smem:[#allocation0]]
  $region122: #{tpu_custom_call.1} parent=0
    _
  %s10 = ssub.s32 1, %s8
  %s11 = scalar_select 0, %s10, %s8
  $region1: #{tpu_custom_call.1} parent=0
    #allocation3 [shape = 'u8[16384]{0}', space=vmem, size = 0x4000, scoped, tag = 'input window, operand 1, single buffered']
    #allocation4 [shape = 'u8[16384]{0}', space=vmem, size = 0x4000, scoped, tag = 'input window, operand 2, single buffered']
    #allocation5 [shape = 'u8[8192]{0}', space=vmem, size = 0x2000, scoped, tag = 'output window, operand 0, single buffered']
    #allocation6 [shape = 's32[1]{0}', space=sflag, size = 0x4, scoped, tag = 'scoped memory for tpu_custom_call.1']
    %12 = vsyncpa [#allocation6], 0
    // Predicated region
    $region2: #{tpu_custom_call.1} parent=1 // pred_check
      _
    $region3: #{tpu_custom_call.1} parent=1 // pred_check_branch
      %14 = sbr.rel (0) target = $region5
    $region4: #{tpu_custom_call.1} parent=1 // pred_region
      _
    $region5: #{tpu_custom_call.1} parent=1 // pred_fallthru
      _
    // Predicated region
    $region6: #{tpu_custom_call.1} parent=1 // pred_check
      _
    $region7: #{tpu_custom_call.1} parent=1 // pred_check_branch
      %16 = sbr.rel (0) target = $region9
    $region8: #{tpu_custom_call.1} parent=1 // pred_region
      // Predicated region
      $region10: #{tpu_custom_call.1} parent=8 // pred_check
        _
      $region11: #{tpu_custom_call.1} parent=8 // pred_check_branch
        %18 = sbr.rel (0) target = $region13
      $region12: #{tpu_custom_call.1} parent=8 // pred_region
        // Predicated region
        $region14: #{tpu_custom_call.1} parent=12 // pred_check
          _
        $region15: #{tpu_custom_call.1} parent=12 // pred_check_branch
          %20 = sbr.rel (0) target = $region17
        $region16: #{tpu_custom_call.1} parent=12 // pred_region
          // Predicated region
          $region29: #{tpu_custom_call.1} parent=16 // pred_check
            _
          $region30: #{tpu_custom_call.1} parent=16 // pred_check_branch
            %42 = sbr.rel (0) target = $region32
          $region31: #{tpu_custom_call.1} parent=16 // pred_region
            loop: start=0, step=1, limit=1
            $region33: #{tpu_custom_call.1} parent=31 // loop_pre_header
              _
            $region34: #{tpu_custom_call.1} parent=31 // loop_header
              %s44 = sphi 0, %s48
              %p45 = scmp.ge.s32.totalorder %s44, 1
              %s49 = sphi %s1, %s1
              %s50 = sphi [#allocation3], [#allocation3]
            $region35: #{tpu_custom_call.1} parent=31 // loop_header_branch
              %47 = sbr.rel (%p45) target = $region39
            $region36: #{tpu_custom_call.1} parent=31 // loop_body
              %v51 = vld [vmem:[%s49] sm:$0xff]
              %52 = vst [vmem:[%s50] sm:$0xff] %v51
              %v53 = vld [vmem:[%s49 + $0x10] sm:$0xff]
              %54 = vst [vmem:[%s50 + $0x8] sm:$0xff] %v53
              %v55 = vld [vmem:[%s49 + $0x20] sm:$0xff]
              %56 = vst [vmem:[%s50 + $0x10] sm:$0xff] %v55
              %v57 = vld [vmem:[%s49 + $0x30] sm:$0xff]
              %58 = vst [vmem:[%s50 + $0x18] sm:$0xff] %v57
            $region37: #{tpu_custom_call.1} parent=31 // loop_footer
              %s48 = sadd.s32 1, %s44
            $region38: #{tpu_custom_call.1} parent=31 // loop_footer_branch
              %43 = sbr.rel target = $region34
            $region39: #{tpu_custom_call.1} parent=31 // loop_exit
              _
          $region32: #{tpu_custom_call.1} parent=16 // pred_fallthru
            _
          // Predicated region
          $region40: #{tpu_custom_call.1} parent=16 // pred_check
            _
          $region41: #{tpu_custom_call.1} parent=16 // pred_check_branch
            %60 = sbr.rel target = $region43
          $region42: #{tpu_custom_call.1} parent=16 // pred_region
            _
          $region43: #{tpu_custom_call.1} parent=16 // pred_fallthru
            _
        $region17: #{tpu_custom_call.1} parent=12 // pred_fallthru
          _
        // Predicated region
        $region18: #{tpu_custom_call.1} parent=12 // pred_check
          _
        $region19: #{tpu_custom_call.1} parent=12 // pred_check_branch
          %22 = sbr.rel target = $region21
        $region20: #{tpu_custom_call.1} parent=12 // pred_region
          %s24 = ssub.s32 256, 1
          loop: start=0, step=1, limit=1
          $region22: #{tpu_custom_call.1} parent=20 // loop_pre_header
            _
          $region23: #{tpu_custom_call.1} parent=20 // loop_header
            %s26 = sphi 0, %s30
            %p27 = scmp.ge.s32.totalorder %s26, 1
            %s31 = sphi %s1, %s1
            %s32 = sphi [#allocation3], [#allocation3]
          $region24: #{tpu_custom_call.1} parent=20 // loop_header_branch
            %29 = sbr.rel (%p27) target = $region28
          $region25: #{tpu_custom_call.1} parent=20 // loop_body
            %v33 = vld [vmem:[%s31] sm:%s24]
            %34 = vst [vmem:[%s32] sm:%s24] %v33
            %v35 = vld [vmem:[%s31 + $0x10] sm:%s24]
            %36 = vst [vmem:[%s32 + $0x8] sm:%s24] %v35
            %v37 = vld [vmem:[%s31 + $0x20] sm:%s24]
            %38 = vst [vmem:[%s32 + $0x10] sm:%s24] %v37
            %v39 = vld [vmem:[%s31 + $0x30] sm:%s24]
            %40 = vst [vmem:[%s32 + $0x18] sm:%s24] %v39
          $region26: #{tpu_custom_call.1} parent=20 // loop_footer
            %s30 = sadd.s32 1, %s26
          $region27: #{tpu_custom_call.1} parent=20 // loop_footer_branch
            %25 = sbr.rel target = $region23
          $region28: #{tpu_custom_call.1} parent=20 // loop_exit
            _
        $region21: #{tpu_custom_call.1} parent=12 // pred_fallthru
          _
      $region13: #{tpu_custom_call.1} parent=8 // pred_fallthru
        _
      %61 = vnop
    $region9: #{tpu_custom_call.1} parent=1 // pred_fallthru
      _
    // Predicated region
    $region44: #{tpu_custom_call.1} parent=1 // pred_check
      _
    $region45: #{tpu_custom_call.1} parent=1 // pred_check_branch
      %63 = sbr.rel (0) target = $region47
    $region46: #{tpu_custom_call.1} parent=1 // pred_region
      %s64 = sadd.s32 0, 1
      %s65 = smul.addr %s64, 8
      %s66 = scalar_lea.vmem %s2, %s65
      // Predicated region
      $region48: #{tpu_custom_call.1} parent=46 // pred_check
        _
      $region49: #{tpu_custom_call.1} parent=46 // pred_check_branch
        %68 = sbr.rel (0) target = $region51
      $region50: #{tpu_custom_call.1} parent=46 // pred_region
        // Predicated region
        $region52: #{tpu_custom_call.1} parent=50 // pred_check
          _
        $region53: #{tpu_custom_call.1} parent=50 // pred_check_branch
          %70 = sbr.rel (0) target = $region55
        $region54: #{tpu_custom_call.1} parent=50 // pred_region
          // Predicated region
          $region67: #{tpu_custom_call.1} parent=54 // pred_check
            _
          $region68: #{tpu_custom_call.1} parent=54 // pred_check_branch
            %92 = sbr.rel (0) target = $region70
          $region69: #{tpu_custom_call.1} parent=54 // pred_region
            loop: start=0, step=1, limit=1
            $region71: #{tpu_custom_call.1} parent=69 // loop_pre_header
              _
            $region72: #{tpu_custom_call.1} parent=69 // loop_header
              %s94 = sphi 0, %s98
              %p95 = scmp.ge.s32.totalorder %s94, 1
              %s99 = sphi %s66, %s66
              %s100 = sphi [#allocation4], [#allocation4]
            $region73: #{tpu_custom_call.1} parent=69 // loop_header_branch
              %97 = sbr.rel (%p95) target = $region77
            $region74: #{tpu_custom_call.1} parent=69 // loop_body
              %v101 = vld [vmem:[%s99] sm:$0xff]
              %102 = vst [vmem:[%s100] sm:$0xff] %v101
              %v103 = vld [vmem:[%s99 + $0x10] sm:$0xff]
              %104 = vst [vmem:[%s100 + $0x8] sm:$0xff] %v103
              %v105 = vld [vmem:[%s99 + $0x20] sm:$0xff]
              %106 = vst [vmem:[%s100 + $0x10] sm:$0xff] %v105
              %v107 = vld [vmem:[%s99 + $0x30] sm:$0xff]
              %108 = vst [vmem:[%s100 + $0x18] sm:$0xff] %v107
            $region75: #{tpu_custom_call.1} parent=69 // loop_footer
              %s98 = sadd.s32 1, %s94
            $region76: #{tpu_custom_call.1} parent=69 // loop_footer_branch
              %93 = sbr.rel target = $region72
            $region77: #{tpu_custom_call.1} parent=69 // loop_exit
              _
          $region70: #{tpu_custom_call.1} parent=54 // pred_fallthru
            _
          // Predicated region
          $region78: #{tpu_custom_call.1} parent=54 // pred_check
            _
          $region79: #{tpu_custom_call.1} parent=54 // pred_check_branch
            %110 = sbr.rel target = $region81
          $region80: #{tpu_custom_call.1} parent=54 // pred_region
            _
          $region81: #{tpu_custom_call.1} parent=54 // pred_fallthru
            _
        $region55: #{tpu_custom_call.1} parent=50 // pred_fallthru
          _
        // Predicated region
        $region56: #{tpu_custom_call.1} parent=50 // pred_check
          _
        $region57: #{tpu_custom_call.1} parent=50 // pred_check_branch
          %72 = sbr.rel target = $region59
        $region58: #{tpu_custom_call.1} parent=50 // pred_region
          %s74 = ssub.s32 256, 1
          loop: start=0, step=1, limit=1
          $region60: #{tpu_custom_call.1} parent=58 // loop_pre_header
            _
          $region61: #{tpu_custom_call.1} parent=58 // loop_header
            %s76 = sphi 0, %s80
            %p77 = scmp.ge.s32.totalorder %s76, 1
            %s81 = sphi %s66, %s66
            %s82 = sphi [#allocation4], [#allocation4]
          $region62: #{tpu_custom_call.1} parent=58 // loop_header_branch
            %79 = sbr.rel (%p77) target = $region66
          $region63: #{tpu_custom_call.1} parent=58 // loop_body
            %v83 = vld [vmem:[%s81] sm:%s74]
            %84 = vst [vmem:[%s82] sm:%s74] %v83
            %v85 = vld [vmem:[%s81 + $0x10] sm:%s74]
            %86 = vst [vmem:[%s82 + $0x8] sm:%s74] %v85
            %v87 = vld [vmem:[%s81 + $0x20] sm:%s74]
            %88 = vst [vmem:[%s82 + $0x10] sm:%s74] %v87
            %v89 = vld [vmem:[%s81 + $0x30] sm:%s74]
            %90 = vst [vmem:[%s82 + $0x18] sm:%s74] %v89
          $region64: #{tpu_custom_call.1} parent=58 // loop_footer
            %s80 = sadd.s32 1, %s76
          $region65: #{tpu_custom_call.1} parent=58 // loop_footer_branch
            %75 = sbr.rel target = $region61
          $region66: #{tpu_custom_call.1} parent=58 // loop_exit
            _
        $region59: #{tpu_custom_call.1} parent=50 // pred_fallthru
          _
      $region51: #{tpu_custom_call.1} parent=46 // pred_fallthru
        _
      %111 = vnop
    $region47: #{tpu_custom_call.1} parent=1 // pred_fallthru
      _
    // Predicated region
    $region82: #{tpu_custom_call.1} parent=1 // pred_check
      _
    $region83: #{tpu_custom_call.1} parent=1 // pred_check_branch
      %113 = sbr.rel (0) target = $region85
    $region84: #{tpu_custom_call.1} parent=1 // pred_region
      _
    $region85: #{tpu_custom_call.1} parent=1 // pred_fallthru
      _
    // Predicated region
    $region86: #{tpu_custom_call.1} parent=1 // pred_check
      _
    $region87: #{tpu_custom_call.1} parent=1 // pred_check_branch
      %115 = sbr.rel (0) target = $region89
    $region88: #{tpu_custom_call.1} parent=1 // pred_region
      %s116 = sadd.s32 0, 1
      %p117 = scmp.lt.s32.totalorder %s116, 1
      %s118 = scalar_select %p117, %s116, 1
      %s119 = scalar_lea.vmem %s4, %s118
      %s120 = sadd.s32 0, 1
    $region89: #{tpu_custom_call.1} parent=1 // pred_fallthru
      _
    // Predicated region
    $region90: #{tpu_custom_call.1} parent=1 // pred_check
      _
    $region91: #{tpu_custom_call.1} parent=1 // pred_check_branch
      %122 = sbr.rel (0) target = $region93
    $region92: #{tpu_custom_call.1} parent=1 // pred_region
      _
    $region93: #{tpu_custom_call.1} parent=1 // pred_fallthru
      _
    // Predicated region
    $region94: #{tpu_custom_call.1} parent=1 // pred_check
      _
    $region95: #{tpu_custom_call.1} parent=1 // pred_check_branch
      %124 = sbr.rel (0) target = $region97
    $region96: #{tpu_custom_call.1} parent=1 // pred_region
      _
    $region97: #{tpu_custom_call.1} parent=1 // pred_fallthru
      _
    // Predicated region
    $region98: #{tpu_custom_call.1} parent=1 // pred_check
      _
    $region99: #{tpu_custom_call.1} parent=1 // pred_check_branch
      %126 = sbr.rel (0) target = $region101
    $region100: #{tpu_custom_call.1} parent=1 // pred_region
      _
    $region101: #{tpu_custom_call.1} parent=1 // pred_fallthru
      _
    // Predicated region
    $region102: #{tpu_custom_call.1} parent=1 // pred_check
      _
    $region103: #{tpu_custom_call.1} parent=1 // pred_check_branch
      %128 = sbr.rel (0) target = $region105
    $region104: #{tpu_custom_call.1} parent=1 // pred_region
      _
    $region105: #{tpu_custom_call.1} parent=1 // pred_fallthru
      _
    %s129 = sadd.s32 0, 1
    %p130 = scmp.lt.s32.totalorder %s129, 1
    %s131 = scalar_select %p130, %s129, 1
    %s132 = scalar_lea.vmem %s4, %s131
    %s133 = sadd.s32 0, 1
    %s134 = sadd.s32 0, 1
    %p135 = scmp.lt.s32.totalorder %s134, 1
    %s136 = scalar_select %p135, %s134, 1
    %s137 = scalar_lea.vmem %s4, %s136
    %s138 = sadd.s32 0, 1
    %p139 = scmp.eq.s32.totalorder 0, 0
    // Predicated region
    $region106: #{tpu_custom_call.1} parent=1 // pred_check
      %p140 = pneg %p139
    $region107: #{tpu_custom_call.1} parent=1 // pred_check_branch
      %142 = sbr.rel (%p140) target = $region109
    $region108: #{tpu_custom_call.1} parent=1 // pred_region
      %vm143 = vcmask 261120
      %144 = vst.msk [vmem:[#allocation2] sm:$0xff] %vm143, 0.0
      %145 = vst.msk [vmem:[#allocation2 + $0x8] sm:$0xff] %vm143, 0.0
    $region109: #{tpu_custom_call.1} parent=1 // pred_fallthru
      _
    %v146 = vld [vmem:[%s0] sm:$0xff]
    %v147 = vld [vmem:[%s0 + $0x8] sm:$0xff]
    %v148 = vld [vmem:[#allocation3] sm:$0xff]
    %v149 = vld [vmem:[#allocation3 + $0x8] sm:$0xff]
    %v150 = vld [vmem:[#allocation3 + $0x10] sm:$0xff]
    %v151 = vld [vmem:[#allocation3 + $0x18] sm:$0xff]
    %v152 = vld [vmem:[#allocation4] sm:$0xff]
    %v153 = vld [vmem:[#allocation4 + $0x8] sm:$0xff]
    %v154 = vld [vmem:[#allocation4 + $0x10] sm:$0xff]
    %v155 = vld [vmem:[#allocation4 + $0x18] sm:$0xff]
    %v156 = vld [vmem:[%s3] sm:$0x1]
    %v158 = vlaneseq
    %v159 = vshrl.u32 %v158, 7
    %v160 = vsub.s32 0, %v159
    %v161 = vrot.slane %v156, %v160
    %vm163 = vcmask 261120
    %v165 = vsel %vm163, %v146, 0
    %v168 = vsel %vm163, %v147, 0
    %170 = vmatprep.subr.mxu0 0.0
    %171 = vmatpush1.msra.mxu0 0.0
    %172 = vmatprep.subr.mxu0 0.0
    %173 = vmatpush1.msra.mxu0 0.0
    %174 = vmatprep.subr.mxu0 0.0
    %175 = vmatpush1.msra.mxu0 0.0
    %176 = vmatprep.subr.mxu0 0.0
    %177 = vmatpush1.msra.mxu0 0.0
    %178 = vmatprep.subr.mxu0 0.0
    %179 = vmatpush1.msra.mxu0 0.0
    %180 = vmatprep.subr.mxu0 0.0
    %181 = vmatpush1.msra.mxu0 0.0
    %182 = vmatprep.subr.mxu0 0.0
    %183 = vmatpush1.msra.mxu0 0.0
    %184 = vmatprep.subr.mxu0 0.0
    %185 = vmatpush1.msra.mxu0 0.0
    %186 = vmatprep.subr.mxu0 0.0
    %187 = vmatpush1.msra.mxu0 0.0
    %188 = vmatprep.subr.mxu0 0.0
    %189 = vmatpush1.msra.mxu0 0.0
    %190 = vmatprep.subr.mxu0 0.0
    %191 = vmatpush1.msra.mxu0 0.0
    %192 = vmatprep.subr.mxu0 0.0
    %193 = vmatpush1.msra.mxu0 0.0
    %194 = vmatprep.subr.mxu0 0.0
    %195 = vmatpush1.msra.mxu0 %v151
    %196 = vmatprep.subr.mxu0 0.0
    %197 = vmatpush1.msra.mxu0 %v150
    %198 = vmatprep.subr.mxu0 0.0
    %199 = vmatpush1.msra.mxu0 %v149
    %200 = vmatprep.subr.mxu0 0.0
    %201 = vmatpush1.msra.mxu0 %v148
    %202 = vmatprep.subr.mxu0 0.0
    %203 = vmatpush2.msra.mxu0 0.0
    %204 = vmatprep.subr.mxu0 0.0
    %205 = vmatpush2.msra.mxu0 0.0
    %206 = vmatprep.subr.mxu0 0.0
    %207 = vmatpush2.msra.mxu0 0.0
    %208 = vmatprep.subr.mxu0 0.0
    %209 = vmatpush2.msra.mxu0 0.0
    %210 = vmatprep.subr.mxu0 0.0
    %211 = vmatpush2.msra.mxu0 0.0
    %212 = vmatprep.subr.mxu0 0.0
    %213 = vmatpush2.msra.mxu0 0.0
    %214 = vmatprep.subr.mxu0 0.0
    %215 = vmatpush2.msra.mxu0 0.0
    %216 = vmatprep.subr.mxu0 0.0
    %217 = vmatpush2.msra.mxu0 0.0
    %218 = vmatprep.subr.mxu0 0.0
    %219 = vmatpush2.msra.mxu0 0.0
    %220 = vmatprep.subr.mxu0 0.0
    %221 = vmatpush2.msra.mxu0 0.0
    %222 = vmatprep.subr.mxu0 0.0
    %223 = vmatpush2.msra.mxu0 0.0
    %224 = vmatprep.subr.mxu0 0.0
    %225 = vmatpush2.msra.mxu0 0.0
    %226 = vmatprep.subr.mxu0 0.0
    %227 = vmatpush2.msra.mxu0 0.0
    %228 = vmatprep.subr.mxu0 0.0
    %229 = vmatpush2.msra.mxu0 0.0
    %230 = vmatprep.subr.mxu0 0.0
    %231 = vmatpush2.msra.mxu0 0.0
    %232 = vmatprep.subr.mxu0 0.0
    %233 = vmatpush2.msra.mxu0 0.0
    %234 = vmatprep.mubr.f32.mxu0 0.0
    %235 = vmatmul.mubr.f32.gmra.mxu0 %v165
    %v236 = vpop.f32.mrf.mxu0
    %v237 = vadd.f32 %v161, %v236
    %v238 = vpop.f32.mrf.mxu0
    %239 = vmatprep.mubr.f32.mxu0 0.0
    %240 = vmatmul.mubr.f32.gmra.mxu0 %v168
    %v241 = vpop.f32.mrf.mxu0
    %v242 = vadd.f32 %v161, %v241
    %v243 = vpop.f32.mrf.mxu0
    %244 = vdwg.mxu0
    %v245 = vld [vmem:[%s137] sm:$0x1]
    %v247 = vlaneseq
    %v248 = vshrl.u32 %v247, 7
    %v249 = vsub.s32 0, %v248
    %v250 = vrot.slane %v245, %v249
    %252 = vmatprep.subr.mxu0 0.0
    %253 = vmatpush1.msra.mxu0 0.0
    %254 = vmatprep.subr.mxu0 0.0
    %255 = vmatpush1.msra.mxu0 0.0
    %256 = vmatprep.subr.mxu0 0.0
    %257 = vmatpush1.msra.mxu0 0.0
    %258 = vmatprep.subr.mxu0 0.0
    %259 = vmatpush1.msra.mxu0 0.0
    %260 = vmatprep.subr.mxu0 0.0
    %261 = vmatpush1.msra.mxu0 0.0
    %262 = vmatprep.subr.mxu0 0.0
    %263 = vmatpush1.msra.mxu0 0.0
    %264 = vmatprep.subr.mxu0 0.0
    %265 = vmatpush1.msra.mxu0 0.0
    %266 = vmatprep.subr.mxu0 0.0
    %267 = vmatpush1.msra.mxu0 0.0
    %268 = vmatprep.subr.mxu0 0.0
    %269 = vmatpush1.msra.mxu0 0.0
    %270 = vmatprep.subr.mxu0 0.0
    %271 = vmatpush1.msra.mxu0 0.0
    %272 = vmatprep.subr.mxu0 0.0
    %273 = vmatpush1.msra.mxu0 0.0
    %274 = vmatprep.subr.mxu0 0.0
    %275 = vmatpush1.msra.mxu0 0.0
    %276 = vmatprep.subr.mxu0 0.0
    %277 = vmatpush1.msra.mxu0 %v155
    %278 = vmatprep.subr.mxu0 0.0
    %279 = vmatpush1.msra.mxu0 %v154
    %280 = vmatprep.subr.mxu0 0.0
    %281 = vmatpush1.msra.mxu0 %v153
    %282 = vmatprep.subr.mxu0 0.0
    %283 = vmatpush1.msra.mxu0 %v152
    %284 = vmatprep.subr.mxu0 0.0
    %285 = vmatpush2.msra.mxu0 0.0
    %286 = vmatprep.subr.mxu0 0.0
    %287 = vmatpush2.msra.mxu0 0.0
    %288 = vmatprep.subr.mxu0 0.0
    %289 = vmatpush2.msra.mxu0 0.0
    %290 = vmatprep.subr.mxu0 0.0
    %291 = vmatpush2.msra.mxu0 0.0
    %292 = vmatprep.subr.mxu0 0.0
    %293 = vmatpush2.msra.mxu0 0.0
    %294 = vmatprep.subr.mxu0 0.0
    %295 = vmatpush2.msra.mxu0 0.0
    %296 = vmatprep.subr.mxu0 0.0
    %297 = vmatpush2.msra.mxu0 0.0
    %298 = vmatprep.subr.mxu0 0.0
    %299 = vmatpush2.msra.mxu0 0.0
    %300 = vmatprep.subr.mxu0 0.0
    %301 = vmatpush2.msra.mxu0 0.0
    %302 = vmatprep.subr.mxu0 0.0
    %303 = vmatpush2.msra.mxu0 0.0
    %304 = vmatprep.subr.mxu0 0.0
    %305 = vmatpush2.msra.mxu0 0.0
    %306 = vmatprep.subr.mxu0 0.0
    %307 = vmatpush2.msra.mxu0 0.0
    %308 = vmatprep.subr.mxu0 0.0
    %309 = vmatpush2.msra.mxu0 0.0
    %310 = vmatprep.subr.mxu0 0.0
    %311 = vmatpush2.msra.mxu0 0.0
    %312 = vmatprep.subr.mxu0 0.0
    %313 = vmatpush2.msra.mxu0 0.0
    %314 = vmatprep.subr.mxu0 0.0
    %315 = vmatpush2.msra.mxu0 0.0
    %316 = vmatprep.mubr.f32.mxu0 0.0
    %317 = vmatmul.mubr.f32.gmra.mxu0 %v165
    %v318 = vpop.f32.mrf.mxu0
    %v319 = vadd.f32 %v250, %v318
    %v320 = vpop.f32.mrf.mxu0
    %321 = vmatprep.mubr.f32.mxu0 0.0
    %322 = vmatmul.mubr.f32.gmra.mxu0 %v168
    %v323 = vpop.f32.mrf.mxu0
    %v324 = vadd.f32 %v250, %v323
    %v325 = vpop.f32.mrf.mxu0
    %326 = vdwg.mxu0
    %v327 = vmul.f32 %v319, 0.5
    %v328 = vmul.f32 %v324, 0.5
    %v329 = vmul.f32 %v319, 0.044715
    %v330 = vmul.f32 %v324, 0.044715
    %v331 = vmul.f32 %v329, %v319
    %v332 = vmul.f32 %v330, %v324
    %v333 = vmul.f32 %v331, %v319
    %v334 = vmul.f32 %v332, %v324
    %v335 = vadd.f32 %v319, %v333
    %v336 = vadd.f32 %v324, %v334
    %v337 = vmul.f32 %v335, 0.7978846
    %v338 = vmul.f32 %v336, 0.7978846
    %v339 = vtanh.pop %v337
    %v340 = vtanh.pop %v338
    %v341 = vadd.f32 %v339, 1.0
    %v342 = vadd.f32 %v340, 1.0
    %v343 = vmul.f32 %v327, %v341
    %v344 = vmul.f32 %v328, %v342
    %v345 = vmul.f32 %v237, %v343
    %v346 = vmul.f32 %v242, %v344
    %v347 = vld [vmem:[#allocation2] sm:$0xff]
    %v348 = vld [vmem:[#allocation2 + $0x8] sm:$0xff]
    %v349 = vld [vmem:[%s5] sm:$0xff]
    %v350 = vld [vmem:[%s5 + $0x8] sm:$0xff]
    %v351 = vld [vmem:[%s5 + $0x10] sm:$0xff]
    %v352 = vld [vmem:[%s5 + $0x18] sm:$0xff]
    %v353 = vld [vmem:[%s5 + $0x20] sm:$0xff]
    %v354 = vld [vmem:[%s5 + $0x28] sm:$0xff]
    %v355 = vld [vmem:[%s5 + $0x30] sm:$0xff]
    %v356 = vld [vmem:[%s5 + $0x38] sm:$0xff]
    %v357 = vld [vmem:[%s5 + $0x40] sm:$0xff]
    %v358 = vld [vmem:[%s5 + $0x48] sm:$0xff]
    %v359 = vld [vmem:[%s5 + $0x50] sm:$0xff]
    %v360 = vld [vmem:[%s5 + $0x58] sm:$0xff]
    %v361 = vld [vmem:[%s5 + $0x60] sm:$0xff]
    %v362 = vld [vmem:[%s5 + $0x68] sm:$0xff]
    %v363 = vld [vmem:[%s5 + $0x70] sm:$0xff]
    %v364 = vld [vmem:[%s5 + $0x78] sm:$0xff]
    %365 = vmatprep.subr.mxu0 0.0
    %366 = vmatpush1.msra.mxu0 %v364
    %367 = vmatprep.subr.mxu0 0.0
    %368 = vmatpush1.msra.mxu0 %v363
    %369 = vmatprep.subr.mxu0 0.0
    %370 = vmatpush1.msra.mxu0 %v362
    %371 = vmatprep.subr.mxu0 0.0
    %372 = vmatpush1.msra.mxu0 %v361
    %373 = vmatprep.subr.mxu0 0.0
    %374 = vmatpush1.msra.mxu0 %v360
    %375 = vmatprep.subr.mxu0 0.0
    %376 = vmatpush1.msra.mxu0 %v359
    %377 = vmatprep.subr.mxu0 0.0
    %378 = vmatpush1.msra.mxu0 %v358
    %379 = vmatprep.subr.mxu0 0.0
    %380 = vmatpush1.msra.mxu0 %v357
    %381 = vmatprep.subr.mxu0 0.0
    %382 = vmatpush1.msra.mxu0 %v356
    %383 = vmatprep.subr.mxu0 0.0
    %384 = vmatpush1.msra.mxu0 %v355
    %385 = vmatprep.subr.mxu0 0.0
    %386 = vmatpush1.msra.mxu0 %v354
    %387 = vmatprep.subr.mxu0 0.0
    %388 = vmatpush1.msra.mxu0 %v353
    %389 = vmatprep.subr.mxu0 0.0
    %390 = vmatpush1.msra.mxu0 %v352
    %391 = vmatprep.subr.mxu0 0.0
    %392 = vmatpush1.msra.mxu0 %v351
    %393 = vmatprep.subr.mxu0 0.0
    %394 = vmatpush1.msra.mxu0 %v350
    %395 = vmatprep.subr.mxu0 0.0
    %396 = vmatpush1.msra.mxu0 %v349
    %397 = vmatprep.subr.mxu0 0.0
    %398 = vmatpush2.msra.mxu0 0.0
    %399 = vmatprep.subr.mxu0 0.0
    %400 = vmatpush2.msra.mxu0 0.0
    %401 = vmatprep.subr.mxu0 0.0
    %402 = vmatpush2.msra.mxu0 0.0
    %403 = vmatprep.subr.mxu0 0.0
    %404 = vmatpush2.msra.mxu0 0.0
    %405 = vmatprep.subr.mxu0 0.0
    %406 = vmatpush2.msra.mxu0 0.0
    %407 = vmatprep.subr.mxu0 0.0
    %408 = vmatpush2.msra.mxu0 0.0
    %409 = vmatprep.subr.mxu0 0.0
    %410 = vmatpush2.msra.mxu0 0.0
    %411 = vmatprep.subr.mxu0 0.0
    %412 = vmatpush2.msra.mxu0 0.0
    %413 = vmatprep.subr.mxu0 0.0
    %414 = vmatpush2.msra.mxu0 0.0
    %415 = vmatprep.subr.mxu0 0.0
    %416 = vmatpush2.msra.mxu0 0.0
    %417 = vmatprep.subr.mxu0 0.0
    %418 = vmatpush2.msra.mxu0 0.0
    %419 = vmatprep.subr.mxu0 0.0
    %420 = vmatpush2.msra.mxu0 0.0
    %421 = vmatprep.subr.mxu0 0.0
    %422 = vmatpush2.msra.mxu0 0.0
    %423 = vmatprep.subr.mxu0 0.0
    %424 = vmatpush2.msra.mxu0 0.0
    %425 = vmatprep.subr.mxu0 0.0
    %426 = vmatpush2.msra.mxu0 0.0
    %427 = vmatprep.subr.mxu0 0.0
    %428 = vmatpush2.msra.mxu0 0.0
    %429 = vmatprep.mubr.f32.mxu0 0.0
    %430 = vmatmul.mubr.f32.gmra.mxu0 %v345
    %v431 = vpop.f32.mrf.mxu0
    %v432 = vadd.f32 0.0, %v431
    %v433 = vpop.f32.mrf.mxu0
    %434 = vmatprep.mubr.f32.mxu0 0.0
    %435 = vmatmul.mubr.f32.gmra.mxu0 %v346
    %v436 = vpop.f32.mrf.mxu0
    %v437 = vadd.f32 0.0, %v436
    %v438 = vpop.f32.mrf.mxu0
    %439 = vdwg.mxu0
    %v440 = vadd.f32 %v347, %v432
    %v441 = vadd.f32 %v348, %v437
    %442 = vst.msk [vmem:[#allocation2] sm:$0xff] %vm163, %v440
    %443 = vst.msk [vmem:[#allocation2 + $0x8] sm:$0xff] %vm163, %v441
    // Predicated region
    $region110: #{tpu_custom_call.1} parent=1 // pred_check
      %p444 = pneg %p139
    $region111: #{tpu_custom_call.1} parent=1 // pred_check_branch
      %446 = sbr.rel (%p444) target = $region113
    $region112: #{tpu_custom_call.1} parent=1 // pred_region
      %v447 = vld [vmem:[#allocation2] sm:$0xff]
      %v448 = vld [vmem:[#allocation2 + $0x8] sm:$0xff]
      %v449 = vld [vmem:[%s6] sm:$0x1]
      %v451 = vlaneseq
      %v452 = vshrl.u32 %v451, 7
      %v453 = vsub.s32 0, %v452
      %v454 = vrot.slane %v449, %v453
      %v456 = vadd.f32 %v447, %v454
      %v457 = vadd.f32 %v448, %v454
      %458 = vst.msk [vmem:[#allocation5] sm:$0xff] %vm163, %v456
      %459 = vst.msk [vmem:[#allocation5 + $0x8] sm:$0xff] %vm163, %v457
    $region113: #{tpu_custom_call.1} parent=1 // pred_fallthru
      _
    // Predicated region
    $region114: #{tpu_custom_call.1} parent=1 // pred_check
      _
    $region115: #{tpu_custom_call.1} parent=1 // pred_check_branch
      %461 = sbr.rel (0) target = $region117
    $region116: #{tpu_custom_call.1} parent=1 // pred_region
      %s463 = ssub.s32 256, 256
      %464 = vsyncadd [#allocation6], %s463
      %s465 = sshll.u32 [#allocation5], 4
      %s466 = int_to_ptr.vmem [resolvable:$true] %s465
      %471 = dma.vmem_to_hbm [thread:$0]  %s466, 256, %s7, [#allocation6], 128, 128, 8
    $region117: #{tpu_custom_call.1} parent=1 // pred_fallthru
      _
    // Predicated region
    $region118: #{tpu_custom_call.1} parent=1 // pred_check
      _
    $region119: #{tpu_custom_call.1} parent=1 // pred_check_branch
      %473 = sbr.rel (0) target = $region121
    $region120: #{tpu_custom_call.1} parent=1 // pred_region
      %474 = dma.done [#allocation6], 256
    $region121: #{tpu_custom_call.1} parent=1 // pred_fallthru
      _
    %475 = vsyncpa [#allocation6], 1

</llo_original>
